<compile_context>
chip_gen: v6e
topology: v6e:2x2x1
jax: 0.10.0
libtpu: 0.0.40
codegen_flags: <defaults>
</compile_context>

<pallas_src>
import math
import functools

import jax
import jax.numpy as jnp
from jax.experimental import pallas as pl
from jax.experimental.pallas import tpu as pltpu


_GOLDEN = 0x9E3779B9
_MIX1 = 0x7FEB352D
_MIX2 = 0x846CA68B


# ----------------------------------------------------------------------------
# Counter-based dropout mask (pure jnp integer ops -> VPU / interpret-safe)
# ----------------------------------------------------------------------------
def _splitmix32(x):
    x = (x ^ (x >> jnp.uint32(16))) * jnp.uint32(_MIX1)
    x = (x ^ (x >> jnp.uint32(15))) * jnp.uint32(_MIX2)
    x = x ^ (x >> jnp.uint32(16))
    return x


def _keep_mask(row_idx, col_idx, n_cols, seed_u32, thr_u32):
    """keep[i] = hash(global_index, seed) >= thr.  Tiling-independent stream."""
    idx = row_idx.astype(jnp.uint32) * jnp.uint32(n_cols) + col_idx.astype(jnp.uint32)
    h = _splitmix32(idx ^ (seed_u32 * jnp.uint32(_GOLDEN)))
    return h >= thr_u32


# ----------------------------------------------------------------------------
# Kernels (operate on lane-dense 2D blocks of the [R, C] = [B*S1, S2*E] view)
# ----------------------------------------------------------------------------
def _posenc_eval_kernel(x_ref, pe_ref, o_ref):
    # pe_ref is (1, tc) (sublane broadcast) or (tr, tc) (pre-tiled pe period).
    o_ref[...] = x_ref[...] + pe_ref[...]


def _posenc_train_kernel(seed_ref, x_ref, pe_ref, o_ref, *, n_cols, thr, inv_keep):
    y = x_ref[...] + pe_ref[...]
    tr, tc = y.shape
    # Grid is (col OUTER, row INNER): program_id(0)=col block, (1)=row block.
    r0 = pl.program_id(1) * tr
    c0 = pl.program_id(0) * tc
    rows = jax.lax.broadcasted_iota(jnp.int32, y.shape, 0) + r0
    cols = jax.lax.broadcasted_iota(jnp.int32, y.shape, 1) + c0
    keep = _keep_mask(rows, cols, n_cols,
                      seed_ref[0].astype(jnp.uint32), jnp.uint32(thr))
    # Keep the multiply/select in the input dtype (native bf16 VALU on v6e/v7x).
    scale = jnp.asarray(inv_keep, dtype=y.dtype)
    o_ref[...] = jnp.where(keep, y * scale, jnp.zeros_like(y))


# ----------------------------------------------------------------------------
# Helpers
# ----------------------------------------------------------------------------
def make_pe_table(out_channel: int, max_len: int = 20) -> jnp.ndarray:
    """Sinusoidal table identical to the torch buffer pe[:, 0, :]."""
    position = jnp.arange(max_len, dtype=jnp.float32)[:, None]
    div_term = jnp.exp(jnp.arange(0, out_channel, 2, dtype=jnp.float32)
                       * (-math.log(10000.0) / out_channel))
    pe = jnp.zeros((max_len, out_channel), dtype=jnp.float32)
    pe = pe.at[:, 0::2].set(jnp.sin(position * div_term))
    pe = pe.at[:, 1::2].set(jnp.cos(position * div_term))
    return pe


def _largest_div(total, unit, cap):
    """Largest multiple of `unit` dividing `total` that is <= cap (None if none)."""
    cap = min(total, max(cap, unit))
    best, d = None, unit
    while d <= cap:
        if total % d == 0:
            best = d
        d += unit
    return best


def _choose_s1(B, S):
    """Smallest divisor S1 of S with (B*S1) % 8 == 0 (sublane-dense rows)."""
    if B % 8 == 0:
        return 1
    need = 8 // math.gcd(B, 8)
    for s1 in range(need, S + 1, need):
        if S % s1 == 0:
            return s1
    return 1


def _pick_tiles(R, C, itemsize, s1, target_bytes):
    """Pick (tile_r, tile_c) for the [R, C] view, ~target_bytes per block."""
    if C % 128 == 0:
        col_budget = max(128, target_bytes // (8 * itemsize))
        tile_c = _largest_div(C, 128, col_budget) or C
    else:
        tile_c = C                                    # full-dim block is legal
    unit = s1 * (8 // math.gcd(s1, 8))                # lcm(s1, 8)
    if R % unit != 0:
        unit = s1                                     # keep pe-period alignment
    row_budget = max(unit, target_bytes // (tile_c * itemsize))
    tile_r = _largest_div(R, unit, row_budget) or R
    return tile_r, tile_c


# ----------------------------------------------------------------------------
# Wrapper
# ----------------------------------------------------------------------------
def positional_encoding(x, pe_table, *, p=0.1, training=False, seed=0,
                        donate_x=False, small_fallback_bytes=0,
                        target_block_bytes=4 << 20):
    """x: [B, S, E]; pe_table: [max_len, E]. Returns dropout(x + pe[:S])."""
    B, S, E = x.shape
    dtype = x.dtype
    itemsize = jnp.dtype(dtype).itemsize

    apply_dropout = training and p > 0.0
    if apply_dropout and p >= 1.0:
        return jnp.zeros_like(x)                      # degenerate: all dropped

    # 2D lane/sublane-dense view: rows = B*S1 (mult of 8 when possible),
    # cols = S2*E (lane-dense).  Row r of x2d needs pe2d[r % S1].
    s1 = _choose_s1(B, S)
    s2 = S // s1
    R, C = B * s1, s2 * E
    x2d = x.reshape(R, C)
    pe2d = pe_table[:S].astype(dtype).reshape(s1, C)

    thr = min(int(round(p * 4294967296.0)), 4294967295)
    inv_keep = 1.0 / (1.0 - p) if p < 1.0 else 0.0

    # Tiny problems: launch overhead dominates -> plain XLA (same mask stream).
    if R * C * itemsize < small_fallback_bytes:
        y2d = (x + pe_table[:S].astype(dtype)[None, :, :]).reshape(R, C)
        if not apply_dropout:
            return y2d.reshape(B, S, E)
        rows = jnp.arange(R, dtype=jnp.int32)[:, None]
        cols = jnp.arange(C, dtype=jnp.int32)[None, :]
        keep = _keep_mask(rows, cols, C, jnp.uint32(seed), jnp.uint32(thr))
        scale = jnp.asarray(inv_keep, dtype=dtype)
        return jnp.where(keep, y2d * scale, jnp.zeros_like(y2d)).reshape(B, S, E)

    tile_r, tile_c = _pick_tiles(R, C, itemsize, s1, target_block_bytes)
    grid = (C // tile_c, R // tile_r)                 # columns OUTER, rows INNER

    if s1 == 1:
        pe_in, pe_rows = pe2d, 1                      # (1, C): sublane broadcast
    else:
        pe_in, pe_rows = jnp.tile(pe2d, (tile_r // s1, 1)), tile_r

    out_shape = jax.ShapeDtypeStruct((R, C), dtype)
    cparams = pltpu.CompilerParams(
        dimension_semantics=("parallel", "parallel"),
        vmem_limit_bytes=48 * 1024 * 1024,
    )
    cost = pl.CostEstimate(
        flops=R * C,
        transcendentals=0,
        bytes_accessed=(2 * R * C + pe_in.size) * itemsize,
    )

    if not apply_dropout:
        out2d = pl.pallas_call(
            _posenc_eval_kernel,
            out_shape=out_shape,
            grid_spec=pltpu.PrefetchScalarGridSpec(
                num_scalar_prefetch=0,
                grid=grid,
                in_specs=[
                    pl.BlockSpec((tile_r, tile_c), lambda c, r: (r, c)),
                    # pe block index constant along the inner (row) axis -> resident
                    pl.BlockSpec((pe_rows, tile_c), lambda c, r: (0, c)),
                ],
                out_specs=pl.BlockSpec((tile_r, tile_c), lambda c, r: (r, c)),
            ),
            compiler_params=cparams,
            cost_estimate=cost,
            input_output_aliases=({0: 0} if donate_x else {}),
        )(x2d, pe_in)
        return out2d.reshape(B, S, E)

    seed_arr = jnp.asarray([seed], dtype=jnp.int32)
    kernel = functools.partial(_posenc_train_kernel,
                               n_cols=C, thr=thr, inv_keep=inv_keep)
    out2d = pl.pallas_call(
        kernel,
        out_shape=out_shape,
        grid_spec=pltpu.PrefetchScalarGridSpec(
            num_scalar_prefetch=1,                    # seed lives in SMEM
            grid=grid,
            in_specs=[
                pl.BlockSpec((tile_r, tile_c), lambda c, r, s: (r, c)),
                pl.BlockSpec((pe_rows, tile_c), lambda c, r, s: (0, c)),
            ],
            out_specs=pl.BlockSpec((tile_r, tile_c), lambda c, r, s: (r, c)),
        ),
        compiler_params=cparams,
        cost_estimate=cost,
        input_output_aliases=({1: 0} if donate_x else {}),
    )(seed_arr, x2d, pe_in)
    return out2d.reshape(B, S, E)


# ----------------------------------------------------------------------------
# Main
# ----------------------------------------------------------------------------
if __name__ == "__main__":
    B, S, E = 2, 8, 32        # batch, seq_len, embedding_dim (out_channel)
    MAX_LEN = 20
    P = 0.1

    key = jax.random.PRNGKey(0)
    x = jax.random.normal(key, (B, S, E), dtype=jnp.float32)
    pe_table = make_pe_table(E, MAX_LEN)

    # Eval-mode forward (dropout is identity at inference) -- reference check.
    out = positional_encoding(x, pe_table, p=P, training=False)
    out = jax.block_until_ready(out)

    ref = x + pe_table[:S][None, :, :]
    assert out.shape == (B, S, E)
    assert jnp.allclose(out, ref, atol=1e-6), "mismatch vs reference (eval)"

    # Training-mode forward: every element is either 0 (dropped) or
    # ref / (1 - p) (kept) -- check that invariant.
    out_train = positional_encoding(x, pe_table, p=P, training=True, seed=42)
    out_train = jax.block_until_ready(out_train)
    assert out_train.shape == (B, S, E)
    scaled_ref = ref * (1.0 / (1.0 - P))
    kept = out_train != 0.0
    assert jnp.allclose(
        jnp.where(kept, out_train, scaled_ref), scaled_ref, rtol=1e-5, atol=1e-5
    ), "mismatch vs reference (train)"
    n_kept = int(jnp.sum(kept))
    assert 0 < n_kept <= B * S * E, "dropout mask degenerate"

    print("KERNEL_OK")
</pallas_src>

<mosaic_0001>
module attributes {stable_mosaic.version = 11 : i64} {
  func.func @_posenc_eval_kernel(%arg0: i32, %arg1: i32, %arg2: memref<8x64xf32, #tpu.memory_space<vmem>>, %arg3: memref<8x64xf32, #tpu.memory_space<vmem>>, %arg4: memref<8x64xf32, #tpu.memory_space<vmem>>) attributes {dimension_semantics = [#tpu.dimension_semantics<parallel>, #tpu.dimension_semantics<parallel>], iteration_bounds = array<i64: 1, 1>, scalar_prefetch = 0 : i64, scratch_operands = 0 : i64, tpu.core_type = #tpu.core_type<tc>, window_params = [{transform_indices = @transform_0, window_bounds = array<i64: 8, 64>}, {transform_indices = @transform_1, window_bounds = array<i64: 8, 64>}, {transform_indices = @transform_2, window_bounds = array<i64: 8, 64>}]} {
    %c0 = arith.constant 0 : index
    %c0_0 = arith.constant 0 : index
    %0 = vector.load %arg2[%c0, %c0_0] : memref<8x64xf32, #tpu.memory_space<vmem>>, vector<8x64xf32>
    %c0_1 = arith.constant 0 : index
    %c0_2 = arith.constant 0 : index
    %1 = vector.load %arg3[%c0_1, %c0_2] : memref<8x64xf32, #tpu.memory_space<vmem>>, vector<8x64xf32>
    %2 = arith.addf %0, %1 : vector<8x64xf32>
    %c0_3 = arith.constant 0 : index
    %c0_4 = arith.constant 0 : index
    %3 = vector.load %arg4[%c0_3, %c0_4] : memref<8x64xf32, #tpu.memory_space<vmem>>, vector<8x64xf32>
    tpu.vector_store %arg4[%c0_3, %c0_4], %2 {strides = array<i32>} : memref<8x64xf32, #tpu.memory_space<vmem>>, vector<8x64xf32>,
    return
  }
  func.func @transform_0(%arg0: i32, %arg1: i32) -> (i32, i32) {
    %c0_i32 = arith.constant 0 : i32
    return %arg1, %arg0 : i32, i32
  }
  func.func @transform_1(%arg0: i32, %arg1: i32) -> (i32, i32) {
    %c0_i32 = arith.constant 0 : i32
    %c0_i32_0 = arith.constant 0 : i32
    return %c0_i32, %arg0 : i32, i32
  }
  func.func @transform_2(%arg0: i32, %arg1: i32) -> (i32, i32) {
    %c0_i32 = arith.constant 0 : i32
    return %arg1, %arg0 : i32, i32
  }
}

</mosaic_0001>

<llo_original>
// kernel: tpu_custom_call.1
$region0: #{tpu_custom_call.1}
  #allocation0 [shape = 'u32[]', space=smem, size = 0x4, offset = 0x4, fixed_abs, tag = 'smem constant byte address 0x4 - core index']
  #allocation1 [shape = 'u32[144,128]{1,0:T(1,128)}', space=vmem, size = 0x12000, scoped, tag = 'internal scratch']
  %s0 = inlined_call_operand.hbm [shape: f32[8,64], index: 0, kind: input, shape index: {}]
  %s1 = inlined_call_operand.hbm [shape: f32[8,64], index: 1, kind: input, shape index: {}]
  %s2 = inlined_call_operand.hbm [shape: f32[8,64], index: 2, kind: output, shape index: {}]
  %s3 = sld [smem:[#allocation0]]
  $region26: #{tpu_custom_call.1} parent=0
    _
  %s5 = ssub.s32 1, %s3
  %s6 = scalar_select 0, %s5, %s3
  $region1: #{tpu_custom_call.1} parent=0
    #allocation2 [shape = 'u8[4096]{0}', space=vmem, size = 0x1000, scoped, tag = 'input window, operand 0, single buffered']
    #allocation3 [shape = 's32[1]{0}', space=sflag, size = 0x4, scoped, tag = 'scoped memory for tpu_custom_call.1']
    #allocation4 [shape = 's32[1]{0}', space=sflag, size = 0x4, scoped, tag = 'scoped memory for tpu_custom_call.1']
    #allocation5 [shape = 'u8[4096]{0}', space=vmem, size = 0x1000, scoped, tag = 'input window, operand 1, single buffered']
    #allocation6 [shape = 's32[1]{0}', space=sflag, size = 0x4, scoped, tag = 'scoped memory for tpu_custom_call.1']
    #allocation7 [shape = 'u8[4096]{0}', space=vmem, size = 0x1000, scoped, tag = 'output window, operand 0, single buffered']
    %7 = vsyncpa [#allocation3], 0
    %8 = vsyncpa [#allocation6], 0
    %9 = vsyncpa [#allocation4], 0
    // Predicated region
    $region2: #{tpu_custom_call.1} parent=1 // pred_check
      _
    $region3: #{tpu_custom_call.1} parent=1 // pred_check_branch
      %11 = sbr.rel (0) target = $region5
    $region4: #{tpu_custom_call.1} parent=1 // pred_region
      %s13 = ssub.s32 128, 128
      %14 = vsyncadd [#allocation3], %s13
      %s16 = sshll.u32 [#allocation2], 4
      %s17 = int_to_ptr.vmem [resolvable:$true] %s16
      %19 = dma.hbm_to_vmem [thread:$0]  %s0, 128, %s17, [#allocation3]
    $region5: #{tpu_custom_call.1} parent=1 // pred_fallthru
      _
    // Predicated region
    $region6: #{tpu_custom_call.1} parent=1 // pred_check
      _
    $region7: #{tpu_custom_call.1} parent=1 // pred_check_branch
      %21 = sbr.rel (0) target = $region9
    $region8: #{tpu_custom_call.1} parent=1 // pred_region
      %s23 = ssub.s32 128, 128
      %24 = vsyncadd [#allocation6], %s23
      %s26 = sshll.u32 [#allocation5], 4
      %s27 = int_to_ptr.vmem [resolvable:$true] %s26
      %29 = dma.hbm_to_vmem [thread:$0]  %s1, 128, %s27, [#allocation6]
    $region9: #{tpu_custom_call.1} parent=1 // pred_fallthru
      _
    // Predicated region
    $region10: #{tpu_custom_call.1} parent=1 // pred_check
      _
    $region11: #{tpu_custom_call.1} parent=1 // pred_check_branch
      %31 = sbr.rel (0) target = $region13
    $region12: #{tpu_custom_call.1} parent=1 // pred_region
      %32 = dma.done [#allocation3], 128
    $region13: #{tpu_custom_call.1} parent=1 // pred_fallthru
      _
    // Predicated region
    $region14: #{tpu_custom_call.1} parent=1 // pred_check
      _
    $region15: #{tpu_custom_call.1} parent=1 // pred_check_branch
      %34 = sbr.rel (0) target = $region17
    $region16: #{tpu_custom_call.1} parent=1 // pred_region
      %35 = dma.done [#allocation6], 128
    $region17: #{tpu_custom_call.1} parent=1 // pred_fallthru
      _
    %v36 = vld [vmem:[#allocation2] sm:$0xff]
    %v37 = vld [vmem:[#allocation5] sm:$0xff]
    %v38 = vadd.f32 %v36, %v37
    %vm39 = vcmask 523264
    %40 = vst.msk [vmem:[#allocation7] sm:$0xff] %vm39, %v38
    // Predicated region
    $region18: #{tpu_custom_call.1} parent=1 // pred_check
      _
    $region19: #{tpu_custom_call.1} parent=1 // pred_check_branch
      %42 = sbr.rel (0) target = $region21
    $region20: #{tpu_custom_call.1} parent=1 // pred_region
      %s44 = ssub.s32 128, 128
      %45 = vsyncadd [#allocation4], %s44
      %s47 = sshll.u32 [#allocation7], 4
      %s48 = int_to_ptr.vmem [resolvable:$true] %s47
      %50 = dma.vmem_to_hbm [thread:$0]  %s48, 128, %s2, [#allocation4]
    $region21: #{tpu_custom_call.1} parent=1 // pred_fallthru
      _
    // Predicated region
    $region22: #{tpu_custom_call.1} parent=1 // pred_check
      _
    $region23: #{tpu_custom_call.1} parent=1 // pred_check_branch
      %52 = sbr.rel (0) target = $region25
    $region24: #{tpu_custom_call.1} parent=1 // pred_region
      %53 = dma.done [#allocation4], 128
    $region25: #{tpu_custom_call.1} parent=1 // pred_fallthru
      _
    %54 = vsyncpa [#allocation3], 1
    %55 = vsyncpa [#allocation6], 1
    %56 = vsyncpa [#allocation4], 1

</llo_original>
